<compile_context>
chip_gen: v6e
topology: v6e:2x2x1
jax: 0.10.0
libtpu: 0.0.40
codegen_flags: <defaults>
</compile_context>

<pallas_src>
import functools

import jax
import jax.numpy as jnp
from jax.experimental import pallas as pl
from jax.experimental.pallas import tpu as pltpu


# ---------------------------------------------------------------------------
# Prepass: per-topic row max and reciprocal of the (stable) exp row sum.
# ---------------------------------------------------------------------------
def _dirichlet_stats_kernel(beta_ref, m_ref, inv_ref, m_sc, s_sc):
    j = pl.program_id(0)

    @pl.when(j == 0)
    def _():
        m_sc[...] = jnp.full_like(m_sc, -jnp.inf)
        s_sc[...] = jnp.zeros_like(s_sc)

    b = beta_ref[...].astype(jnp.float32)                          # (K, tv)
    m_new = jnp.maximum(m_sc[...], jnp.max(b, axis=-1, keepdims=True))
    s_sc[...] = (s_sc[...] * jnp.exp(m_sc[...] - m_new)
                 + jnp.sum(jnp.exp(b - m_new), axis=-1, keepdims=True))
    m_sc[...] = m_new

    @pl.when(j == pl.num_programs(0) - 1)
    def _():
        m_ref[...] = m_sc[...]
        # One-time reciprocal of a (K, 1) vector; approx lowers to the EUP.
        inv_ref[...] = pl.reciprocal(s_sc[...], approx=True)


def _dirichlet_stats(beta, block_v):
    K, V = beta.shape
    return pl.pallas_call(
        _dirichlet_stats_kernel,
        out_shape=(jax.ShapeDtypeStruct((K, 1), jnp.float32),
                   jax.ShapeDtypeStruct((K, 1), jnp.float32)),
        grid_spec=pltpu.PrefetchScalarGridSpec(
            num_scalar_prefetch=0,
            grid=(V // block_v,),
            in_specs=[pl.BlockSpec((K, block_v), lambda j: (0, j))],
            out_specs=(pl.BlockSpec((K, 1), lambda j: (0, 0)),
                       pl.BlockSpec((K, 1), lambda j: (0, 0))),
            scratch_shapes=[pltpu.VMEM((K, 1), jnp.float32),
                            pltpu.VMEM((K, 1), jnp.float32)],
        ),
        compiler_params=pltpu.CompilerParams(
            dimension_semantics=("arbitrary",)),
        cost_estimate=pl.CostEstimate(
            flops=3 * K * V,
            transcendentals=2 * K * V,
            bytes_accessed=beta.dtype.itemsize * K * V + 8 * K),
    )(beta)


# ---------------------------------------------------------------------------
# Main kernel: x[i-tile, j-tile] = (z * 1)  @  (exp(beta - m) * inv_denom)
# The normalization is folded into the gamma tile, computed once per V-tile.
# ---------------------------------------------------------------------------
def _topic_matmul_kernel(m_ref, inv_ref, z_ref, beta_ref, o_ref, gamma_sc):
    # gamma for the current V-tile is built once (inner N index == 0) and
    # reused for every N-tile: the inner loop is pure DMA + MXU.
    @pl.when(pl.program_id(1) == 0)
    def _():
        b = beta_ref[...].astype(jnp.float32)                      # (K, tn)
        gamma = jnp.exp(b - m_ref[...]) * inv_ref[...]             # row-normalized
        gamma_sc[...] = gamma.astype(gamma_sc.dtype)

    o_ref[...] = jnp.dot(
        z_ref[...].astype(gamma_sc.dtype), gamma_sc[...],
        preferred_element_type=jnp.float32).astype(o_ref.dtype)


def _pick_tile(dim, candidates, granule):
    """Largest candidate tile dividing `dim`; full dim if not granule-aligned."""
    if dim % granule != 0:
        return dim
    for c in candidates:
        if dim % c == 0:
            return c
    return dim


@functools.partial(jax.jit,
                   static_argnames=("block_m", "block_n", "block_v", "mxu_dtype"))
def topic_forward(z, beta, *, block_m=None, block_n=None, block_v=None,
                  mxu_dtype=jnp.float32):
    """z: (N, K) doc-topic weights, beta: (K, V) topic-word logits -> (N, V)."""
    N, K = z.shape
    K2, V = beta.shape
    assert K == K2, "z and beta disagree on the number of topics"

    # Lane-dense V tiles (>=128, large to amortize ~0.35us/step overhead),
    # sublane-aligned N tiles.  Fall back to the full dim when not aligned.
    tn = block_n if block_n is not None else _pick_tile(
        V, (2048, 1024, 512, 256, 128), 128)
    tm = block_m if block_m is not None else _pick_tile(
        N, (512, 256, 128, 64, 32, 16, 8), 8)
    tv = block_v if block_v is not None else _pick_tile(
        V, (4096, 2048, 1024, 512, 256, 128), 128)
    assert V % tn == 0 and N % tm == 0 and V % tv == 0, "tiles must divide dims"

    m, inv_denom = _dirichlet_stats(beta, tv)

    itemsize = 4
    mxu_itemsize = jnp.dtype(mxu_dtype).itemsize
    # Double-buffered IO blocks + resident gamma scratch; cap under v7x's 64 MiB.
    vmem_est = (2 * itemsize * (tm * K + K * tn + tm * tn)
                + mxu_itemsize * K * tn + 4 * itemsize * K)
    vmem_limit = int(min(max(2 * vmem_est, 32 * 1024 * 1024), 48 * 1024 * 1024))

    grid = (V // tn, N // tm)   # V-tiles outer ("parallel"), N-tiles inner

    return pl.pallas_call(
        _topic_matmul_kernel,
        out_shape=jax.ShapeDtypeStruct((N, V), z.dtype),
        grid_spec=pltpu.PrefetchScalarGridSpec(
            num_scalar_prefetch=0,
            grid=grid,
            in_specs=[
                pl.BlockSpec((K, 1), lambda j, i: (0, 0)),     # row max m
                pl.BlockSpec((K, 1), lambda j, i: (0, 0)),     # 1 / row sum
                pl.BlockSpec((tm, K), lambda j, i: (i, 0)),    # z tile
                pl.BlockSpec((K, tn), lambda j, i: (0, j)),    # beta tile
            ],
            out_specs=pl.BlockSpec((tm, tn), lambda j, i: (i, j)),
            scratch_shapes=[pltpu.VMEM((K, tn), mxu_dtype)],
        ),
        compiler_params=pltpu.CompilerParams(
            dimension_semantics=("parallel", "arbitrary"),
            vmem_limit_bytes=vmem_limit,
        ),
        cost_estimate=pl.CostEstimate(
            flops=2 * N * K * V,
            transcendentals=K * V,
            bytes_accessed=itemsize * (N * K + K * V + N * V)),
    )(m, inv_denom, z, beta)


def xavier_uniform(key, shape, dtype=jnp.float32):
    fan_out, fan_in = shape          # torch.empty(K, V): fan_in = V, fan_out = K
    bound = (6.0 / (fan_in + fan_out)) ** 0.5
    return jax.random.uniform(key, shape, dtype, minval=-bound, maxval=bound)


if __name__ == "__main__":
    N, K, V = 64, 16, 1024           # N docs, K topics, V vocab (small demo)
    tau = 1.0                        # stored but unused in forward (fidelity)

    key = jax.random.PRNGKey(0)
    k_beta, k_z = jax.random.split(key)
    beta = xavier_uniform(k_beta, (K, V))                         # nn.Parameter(K, V)
    z = jax.nn.softmax(jax.random.normal(k_z, (N, K)), axis=-1)   # doc-topic mixture

    # Small explicit tiles so the demo exercises a multi-tile grid
    # (4 V-tiles x 2 N-tiles) and the gamma-scratch reuse path.
    out = topic_forward(z, beta, block_m=32, block_n=256, block_v=256)
    out = jax.block_until_ready(out)

    # Pure-JAX reference (stable softmax-style Dirichlet mean).
    bmax = jnp.max(beta, axis=-1, keepdims=True)
    beta_e = jnp.exp(beta - bmax)
    gamma_ref = beta_e / jnp.sum(beta_e, axis=-1, keepdims=True)
    ref = z @ gamma_ref
    assert jnp.allclose(out, ref, atol=1e-5, rtol=1e-5), "mismatch vs reference"

    print("KERNEL_OK")
</pallas_src>

<mosaic_0001>
module attributes {stable_mosaic.version = 11 : i64} {
  func.func @_topic_matmul_kernel(%arg0: i32, %arg1: i32, %arg2: memref<16x1xf32, #tpu.memory_space<vmem>>, %arg3: memref<16x1xf32, #tpu.memory_space<vmem>>, %arg4: memref<32x16xf32, #tpu.memory_space<vmem>>, %arg5: memref<16x256xf32, #tpu.memory_space<vmem>>, %arg6: memref<32x256xf32, #tpu.memory_space<vmem>>, %arg7: memref<16x256xf32, #tpu.memory_space<vmem>>) attributes {dimension_semantics = [#tpu.dimension_semantics<parallel>, #tpu.dimension_semantics<arbitrary>], iteration_bounds = array<i64: 4, 2>, scalar_prefetch = 0 : i64, scratch_operands = 1 : i64, tpu.core_type = #tpu.core_type<tc>, window_params = [{pipeline_mode = #tpu.pipeline_mode<synchronous>, transform_indices = @transform_0, window_bounds = array<i64: 16, 1>}, {pipeline_mode = #tpu.pipeline_mode<synchronous>, transform_indices = @transform_1, window_bounds = array<i64: 16, 1>}, {transform_indices = @transform_2, window_bounds = array<i64: 32, 16>}, {transform_indices = @transform_3, window_bounds = array<i64: 16, 256>}, {transform_indices = @transform_4, window_bounds = array<i64: 32, 256>}]} {
    %c0_i32 = arith.constant 0 : i32
    %0 = arith.cmpi eq, %arg1, %c0_i32 : i32
    %1 = arith.extui %0 : i1 to i32
    %c0_i32_0 = arith.constant 0 : i32
    %2 = arith.cmpi ne, %1, %c0_i32_0 : i32
    scf.if %2 {
      %c0_6 = arith.constant 0 : index
      %c0_7 = arith.constant 0 : index
      %7 = vector.load %arg5[%c0_6, %c0_7] : memref<16x256xf32, #tpu.memory_space<vmem>>, vector<16x256xf32>
      %c0_8 = arith.constant 0 : index
      %c0_9 = arith.constant 0 : index
      %8 = vector.load %arg2[%c0_8, %c0_9] : memref<16x1xf32, #tpu.memory_space<vmem>>, vector<16x1xf32>
      %9 = vector.broadcast %8 : vector<16x1xf32> to vector<16x256xf32>
      %10 = arith.subf %7, %9 : vector<16x256xf32>
      %11 = math.exp %10 : vector<16x256xf32>
      %c0_10 = arith.constant 0 : index
      %c0_11 = arith.constant 0 : index
      %12 = vector.load %arg3[%c0_10, %c0_11] : memref<16x1xf32, #tpu.memory_space<vmem>>, vector<16x1xf32>
      %13 = vector.broadcast %12 : vector<16x1xf32> to vector<16x256xf32>
      %14 = arith.mulf %11, %13 : vector<16x256xf32>
      %c0_12 = arith.constant 0 : index
      %c0_13 = arith.constant 0 : index
      %15 = vector.load %arg7[%c0_12, %c0_13] : memref<16x256xf32, #tpu.memory_space<vmem>>, vector<16x256xf32>
      tpu.vector_store %arg7[%c0_12, %c0_13], %14 {strides = array<i32>} : memref<16x256xf32, #tpu.memory_space<vmem>>, vector<16x256xf32>,
    } else {
    }
    %c0 = arith.constant 0 : index
    %c0_1 = arith.constant 0 : index
    %3 = vector.load %arg4[%c0, %c0_1] : memref<32x16xf32, #tpu.memory_space<vmem>>, vector<32x16xf32>
    %c0_2 = arith.constant 0 : index
    %c0_3 = arith.constant 0 : index
    %4 = vector.load %arg7[%c0_2, %c0_3] : memref<16x256xf32, #tpu.memory_space<vmem>>, vector<16x256xf32>
    %cst = arith.constant dense<0.000000e+00> : vector<32x256xf32>
    %5 = tpu.matmul %3, %4, %cst {dimension_numbers = #tpu.dot_dimension_numbers<[1], [0], [0], [1], [0, 0, 1, 1], [], []>} : vector<32x16xf32>, vector<16x256xf32>, vector<32x256xf32> -> vector<32x256xf32>
    %c0_4 = arith.constant 0 : index
    %c0_5 = arith.constant 0 : index
    %6 = vector.load %arg6[%c0_4, %c0_5] : memref<32x256xf32, #tpu.memory_space<vmem>>, vector<32x256xf32>
    tpu.vector_store %arg6[%c0_4, %c0_5], %5 {strides = array<i32>} : memref<32x256xf32, #tpu.memory_space<vmem>>, vector<32x256xf32>,
    return
  }
  func.func @transform_0(%arg0: i32, %arg1: i32) -> (i32, i32) {
    %c0_i32 = arith.constant 0 : i32
    %c0_i32_0 = arith.constant 0 : i32
    %c0_i32_1 = arith.constant 0 : i32
    return %c0_i32, %c0_i32_0 : i32, i32
  }
  func.func @transform_1(%arg0: i32, %arg1: i32) -> (i32, i32) {
    %c0_i32 = arith.constant 0 : i32
    %c0_i32_0 = arith.constant 0 : i32
    %c0_i32_1 = arith.constant 0 : i32
    return %c0_i32, %c0_i32_0 : i32, i32
  }
  func.func @transform_2(%arg0: i32, %arg1: i32) -> (i32, i32) {
    %c0_i32 = arith.constant 0 : i32
    %c0_i32_0 = arith.constant 0 : i32
    return %arg1, %c0_i32 : i32, i32
  }
  func.func @transform_3(%arg0: i32, %arg1: i32) -> (i32, i32) {
    %c0_i32 = arith.constant 0 : i32
    %c0_i32_0 = arith.constant 0 : i32
    return %c0_i32, %arg0 : i32, i32
  }
  func.func @transform_4(%arg0: i32, %arg1: i32) -> (i32, i32) {
    %c0_i32 = arith.constant 0 : i32
    return %arg1, %arg0 : i32, i32
  }
}

module attributes {stable_mosaic.version = 11 : i64} {
  func.func @_dirichlet_stats_kernel(%arg0: i32, %arg1: memref<16x256xf32, #tpu.memory_space<vmem>>, %arg2: memref<16x1xf32, #tpu.memory_space<vmem>>, %arg3: memref<16x1xf32, #tpu.memory_space<vmem>>, %arg4: memref<16x1xf32, #tpu.memory_space<vmem>>, %arg5: memref<16x1xf32, #tpu.memory_space<vmem>>) attributes {dimension_semantics = [#tpu.dimension_semantics<arbitrary>], iteration_bounds = array<i64: 4>, scalar_prefetch = 0 : i64, scratch_operands = 2 : i64, tpu.core_type = #tpu.core_type<tc>, window_params = [{transform_indices = @transform_0, window_bounds = array<i64: 16, 256>}, {pipeline_mode = #tpu.pipeline_mode<synchronous>, transform_indices = @transform_1, window_bounds = array<i64: 16, 1>}, {pipeline_mode = #tpu.pipeline_mode<synchronous>, transform_indices = @transform_2, window_bounds = array<i64: 16, 1>}]} {
    %c0_i32 = arith.constant 0 : i32
    %0 = arith.cmpi eq, %arg0, %c0_i32 : i32
    %1 = arith.extui %0 : i1 to i32
    %c0_i32_0 = arith.constant 0 : i32
    %2 = arith.cmpi ne, %1, %c0_i32_0 : i32
    scf.if %2 {
      %cst_14 = arith.constant 0xFF800000 : f32
      %24 = vector.broadcast %cst_14 : f32 to vector<16x1xf32>
      %c0_15 = arith.constant 0 : index
      %c0_16 = arith.constant 0 : index
      %25 = vector.load %arg4[%c0_15, %c0_16] : memref<16x1xf32, #tpu.memory_space<vmem>>, vector<16x1xf32>
      tpu.vector_store %arg4[%c0_15, %c0_16], %24 {strides = array<i32>} : memref<16x1xf32, #tpu.memory_space<vmem>>, vector<16x1xf32>,
      %cst_17 = arith.constant 0.000000e+00 : f32
      %26 = vector.broadcast %cst_17 : f32 to vector<16x1xf32>
      %c0_18 = arith.constant 0 : index
      %c0_19 = arith.constant 0 : index
      %27 = vector.load %arg5[%c0_18, %c0_19] : memref<16x1xf32, #tpu.memory_space<vmem>>, vector<16x1xf32>
      tpu.vector_store %arg5[%c0_18, %c0_19], %26 {strides = array<i32>} : memref<16x1xf32, #tpu.memory_space<vmem>>, vector<16x1xf32>,
    } else {
    }
    %c0 = arith.constant 0 : index
    %c0_1 = arith.constant 0 : index
    %3 = vector.load %arg1[%c0, %c0_1] : memref<16x256xf32, #tpu.memory_space<vmem>>, vector<16x256xf32>
    %c0_2 = arith.constant 0 : index
    %c0_3 = arith.constant 0 : index
    %4 = vector.load %arg4[%c0_2, %c0_3] : memref<16x1xf32, #tpu.memory_space<vmem>>, vector<16x1xf32>
    %cst = arith.constant dense<0xFF800000> : vector<16xf32>
    %5 = vector.multi_reduction <maximumf>, %3, %cst [1] : vector<16x256xf32> to vector<16xf32>
    %6 = vector.shape_cast %5 : vector<16xf32> to vector<16x1xf32>
    %7 = arith.maximumf %4, %6 : vector<16x1xf32>
    %c0_4 = arith.constant 0 : index
    %c0_5 = arith.constant 0 : index
    %8 = vector.load %arg5[%c0_4, %c0_5] : memref<16x1xf32, #tpu.memory_space<vmem>>, vector<16x1xf32>
    %c0_6 = arith.constant 0 : index
    %c0_7 = arith.constant 0 : index
    %9 = vector.load %arg4[%c0_6, %c0_7] : memref<16x1xf32, #tpu.memory_space<vmem>>, vector<16x1xf32>
    %10 = arith.subf %9, %7 : vector<16x1xf32>
    %11 = math.exp %10 : vector<16x1xf32>
    %12 = arith.mulf %8, %11 : vector<16x1xf32>
    %13 = vector.broadcast %7 : vector<16x1xf32> to vector<16x256xf32>
    %14 = arith.subf %3, %13 : vector<16x256xf32>
    %15 = math.exp %14 : vector<16x256xf32>
    %cst_8 = arith.constant dense<0.000000e+00> : vector<16xf32>
    %16 = vector.multi_reduction <add>, %15, %cst_8 [1] : vector<16x256xf32> to vector<16xf32>
    %17 = vector.shape_cast %16 : vector<16xf32> to vector<16x1xf32>
    %18 = arith.addf %12, %17 : vector<16x1xf32>
    %c0_9 = arith.constant 0 : index
    %c0_10 = arith.constant 0 : index
    %19 = vector.load %arg5[%c0_9, %c0_10] : memref<16x1xf32, #tpu.memory_space<vmem>>, vector<16x1xf32>
    tpu.vector_store %arg5[%c0_9, %c0_10], %18 {strides = array<i32>} : memref<16x1xf32, #tpu.memory_space<vmem>>, vector<16x1xf32>,
    %c0_11 = arith.constant 0 : index
    %c0_12 = arith.constant 0 : index
    %20 = vector.load %arg4[%c0_11, %c0_12] : memref<16x1xf32, #tpu.memory_space<vmem>>, vector<16x1xf32>
    tpu.vector_store %arg4[%c0_11, %c0_12], %7 {strides = array<i32>} : memref<16x1xf32, #tpu.memory_space<vmem>>, vector<16x1xf32>,
    %c3_i32 = arith.constant 3 : i32
    %21 = arith.cmpi eq, %arg0, %c3_i32 : i32
    %22 = arith.extui %21 : i1 to i32
    %c0_i32_13 = arith.constant 0 : i32
    %23 = arith.cmpi ne, %22, %c0_i32_13 : i32
    scf.if %23 {
      %c0_14 = arith.constant 0 : index
      %c0_15 = arith.constant 0 : index
      %24 = vector.load %arg4[%c0_14, %c0_15] : memref<16x1xf32, #tpu.memory_space<vmem>>, vector<16x1xf32>
      %c0_16 = arith.constant 0 : index
      %c0_17 = arith.constant 0 : index
      %25 = vector.load %arg2[%c0_16, %c0_17] : memref<16x1xf32, #tpu.memory_space<vmem>>, vector<16x1xf32>
      tpu.vector_store %arg2[%c0_16, %c0_17], %24 {strides = array<i32>} : memref<16x1xf32, #tpu.memory_space<vmem>>, vector<16x1xf32>,
      %c0_18 = arith.constant 0 : index
      %c0_19 = arith.constant 0 : index
      %26 = vector.load %arg5[%c0_18, %c0_19] : memref<16x1xf32, #tpu.memory_space<vmem>>, vector<16x1xf32>
      %27 = tpu.reciprocal %26 {approx = true} : vector<16x1xf32> -> vector<16x1xf32>
      %c0_20 = arith.constant 0 : index
      %c0_21 = arith.constant 0 : index
      %28 = vector.load %arg3[%c0_20, %c0_21] : memref<16x1xf32, #tpu.memory_space<vmem>>, vector<16x1xf32>
      tpu.vector_store %arg3[%c0_20, %c0_21], %27 {strides = array<i32>} : memref<16x1xf32, #tpu.memory_space<vmem>>, vector<16x1xf32>,
    } else {
    }
    return
  }
  func.func @transform_0(%arg0: i32) -> (i32, i32) {
    %c0_i32 = arith.constant 0 : i32
    %c0_i32_0 = arith.constant 0 : i32
    return %c0_i32, %arg0 : i32, i32
  }
  func.func @transform_1(%arg0: i32) -> (i32, i32) {
    %c0_i32 = arith.constant 0 : i32
    %c0_i32_0 = arith.constant 0 : i32
    %c0_i32_1 = arith.constant 0 : i32
    return %c0_i32, %c0_i32_0 : i32, i32
  }
  func.func @transform_2(%arg0: i32) -> (i32, i32) {
    %c0_i32 = arith.constant 0 : i32
    %c0_i32_0 = arith.constant 0 : i32
    %c0_i32_1 = arith.constant 0 : i32
    return %c0_i32, %c0_i32_0 : i32, i32
  }
}

</mosaic_0001>

<llo_original>
// kernel: topic_forward.2
$region0: #{topic_forward.2}
  #allocation0 [shape = 'u32[]', space=smem, size = 0x4, offset = 0x4, fixed_abs, tag = 'smem constant byte address 0x4 - core index']
  #allocation1 [shape = 'u32[144,128]{1,0:T(1,128)}', space=vmem, size = 0x12000, scoped, tag = 'internal scratch']
  #allocation2 [shape = 'f32[16,1]{1,0:T(8,128)}', space=vmem, size = 0x2000, scoped, tag = 'scratch operand']
  #allocation3 [shape = 'f32[16,1]{1,0:T(8,128)}', space=vmem, size = 0x2000, scoped, tag = 'scratch operand']
  %s0 = inlined_call_operand.hbm [shape: f32[16,1024], index: 0, kind: input, shape index: {}]
  %s1 = inlined_call_operand.vmem [shape: f32[16,1], index: 1, kind: output, shape index: {0}]
  %s2 = inlined_call_operand.vmem [shape: f32[16,1], index: 2, kind: output, shape index: {1}]
  %3 = xla_tuple %s1, %s2
  %s4 = sld [smem:[#allocation0]]
  $region57: #{topic_forward.2} parent=0
    _
  %s6 = ssub.s32 1, %s4
  %s7 = scalar_select 0, %s6, %s4
  $region1: #{topic_forward.2} parent=0
    #allocation4 [shape = 'u8[32768]{0}', space=vmem, size = 0x8000, scoped, tag = 'input window, operand 0']
    #allocation5 [shape = 's32[2]{0}', space=sflag, size = 0x8, scoped, tag = 'scoped memory for topic_forward.2']
    %8 = vsyncpa [#allocation5], 0
    %s9 = scalar_lea.sflag [#allocation5], 1
    %10 = vsyncpa %s9, 0
    loop: start=0, step=1, limit=6
    $region2: #{topic_forward.2} parent=1 // loop_pre_header
      _
    $region3: #{topic_forward.2} parent=1 // loop_header
      %s12 = sphi 0, %s16
      %p13 = scmp.ge.s32.totalorder %s12, 6
      %s22 = sphi 0, %s24
      %s25 = sphi 0, %s22
      %s26 = sphi 0, %s25
      %s42 = sphi 0, %s26
      %s46 = sphi 0, %s46
      %s48 = sphi 0, %s46
      %s49 = sphi 0, %s48
      %s63 = sphi 0, %s49
      %s67 = sphi 0, %s67
      %s69 = sphi 0, %s67
      %s70 = sphi 0, %s69
      %s84 = sphi 0, %s70
    $region4: #{topic_forward.2} parent=1 // loop_header_branch
      %15 = sbr.rel (%p13) target = $region8
    $region5: #{topic_forward.2} parent=1 // loop_body
      %s17 = ssub.s32 %s12, 1
      %s18 = ssub.s32 %s12, 2
      %s19 = sadd.s32 %s12, 1
      %s20 = ssub.s32 %s12, %s19
      %p21 = scmp.eq.s32.totalorder %s20, 0
      %s23 = sadd.s32 %s22, 1
      %s24 = scalar_select %p21, %s22, %s23
      %p27 = pneg %p21
      %p28 = scmp.eq.s32.totalorder %s12, 3
      %p29 = por %p27, %p28
      %p30 = scmp.ne.s32.totalorder %s22, %s25
      %p31 = scmp.eq.s32.totalorder %s12, 0
      %p32 = por %p30, %p31
      %p33 = scmp.ne.s32.totalorder %s22, %s25
      %p34 = scmp.eq.s32.totalorder %s17, 3
      %p35 = por %p33, %p34
      %p36 = scmp.ne.s32.totalorder %s25, %s26
      %p37 = scmp.eq.s32.totalorder %s17, 0
      %p38 = por %p36, %p37
      %p39 = scmp.ne.s32.totalorder %s25, %s26
      %p40 = scmp.eq.s32.totalorder %s18, 3
      %p41 = por %p39, %p40
      %p43 = scmp.ne.s32.totalorder %s26, %s42
      %p44 = scmp.eq.s32.totalorder %s18, 0
      %p45 = por %p43, %p44
      %s47 = sadd.s32 %s46, 1
      %p50 = scmp.eq.s32.totalorder %s12, 3
      %p51 = scmp.ne.s32.totalorder %s46, %s48
      %p52 = scmp.eq.s32.totalorder %s12, 0
      %p53 = por %p51, %p52
      %p54 = scmp.ne.s32.totalorder %s46, %s48
      %p55 = scmp.eq.s32.totalorder %s17, 3
      %p56 = por %p54, %p55
      %p57 = scmp.ne.s32.totalorder %s48, %s49
      %p58 = scmp.eq.s32.totalorder %s17, 0
      %p59 = por %p57, %p58
      %p60 = scmp.ne.s32.totalorder %s48, %s49
      %p61 = scmp.eq.s32.totalorder %s18, 3
      %p62 = por %p60, %p61
      %p64 = scmp.ne.s32.totalorder %s49, %s63
      %p65 = scmp.eq.s32.totalorder %s18, 0
      %p66 = por %p64, %p65
      %s68 = sadd.s32 %s67, 1
      %p71 = scmp.eq.s32.totalorder %s12, 3
      %p72 = scmp.ne.s32.totalorder %s67, %s69
      %p73 = scmp.eq.s32.totalorder %s12, 0
      %p74 = por %p72, %p73
      %p75 = scmp.ne.s32.totalorder %s67, %s69
      %p76 = scmp.eq.s32.totalorder %s17, 3
      %p77 = por %p75, %p76
      %p78 = scmp.ne.s32.totalorder %s69, %s70
      %p79 = scmp.eq.s32.totalorder %s17, 0
      %p80 = por %p78, %p79
      %p81 = scmp.ne.s32.totalorder %s69, %s70
      %p82 = scmp.eq.s32.totalorder %s18, 3
      %p83 = por %p81, %p82
      %p85 = scmp.ne.s32.totalorder %s70, %s84
      %p86 = scmp.eq.s32.totalorder %s18, 0
      %p87 = por %p85, %p86
      %p88 = scmp.le.s32.totalorder 1, %s12
      %p89 = scmp.lt.s32.totalorder %s12, 5
      %p90 = pnand %p88, %p89
      %p91 = pneg %p90
      // Predicated region
      $region9: #{topic_forward.2} parent=5 // pred_check
        _
      $region10: #{topic_forward.2} parent=5 // pred_check_branch
        %93 = sbr.rel (%p90) target = $region12
      $region11: #{topic_forward.2} parent=5 // pred_region
        %s94 = ssub.s32 %s12, 1
      $region12: #{topic_forward.2} parent=5 // pred_fallthru
        _
      %p95 = scmp.lt.s32.totalorder %s12, 4
      // Predicated region
      $region13: #{topic_forward.2} parent=5 // pred_check
        %p96 = pneg %p95
      $region14: #{topic_forward.2} parent=5 // pred_check_branch
        %98 = sbr.rel (%p96) target = $region16
      $region15: #{topic_forward.2} parent=5 // pred_region
        // Predicated region
        $region17: #{topic_forward.2} parent=15 // pred_check
          %p99 = pneg %p32
        $region18: #{topic_forward.2} parent=15 // pred_check_branch
          %101 = sbr.rel (%p99) target = $region20
        $region19: #{topic_forward.2} parent=15 // pred_region
          %s102 = sand.u32 %s22, 1
          %s103 = scalar_lea.sflag [#allocation5], %s102
          %s104 = sand.u32 %s22, 1
          %s105 = smul.addr %s104, 32
          %s106 = scalar_lea.vmem [#allocation4], %s105
          %s107 = smul.u32 2, %s12
          %s109 = ssub.s32 512, 512
          %110 = vsyncadd %s103, %s109
          %s111 = smul.addr %s107, 128
          %s112 = scalar_lea.hbm %s0, %s111
          %s113 = sshll.u32 %s106, 4
          %s114 = int_to_ptr.vmem [resolvable:$true] %s113
          %119 = dma.hbm_to_vmem [thread:$0]  %s112, 512, %s114, %s103, 1024, 256, 16
        $region20: #{topic_forward.2} parent=15 // pred_fallthru
          _
      $region16: #{topic_forward.2} parent=5 // pred_fallthru
        _
      %p120 = scmp.le.s32.totalorder 1, %s12
      %p121 = scmp.lt.s32.totalorder %s12, 5
      %p122 = pnand %p120, %p121
      %p123 = pneg %p122
      // Predicated region
      $region21: #{topic_forward.2} parent=5 // pred_check
        _
      $region22: #{topic_forward.2} parent=5 // pred_check_branch
        %125 = sbr.rel (%p122) target = $region24
      $region23: #{topic_forward.2} parent=5 // pred_region
        %s126 = ssub.s32 %s12, 1
        %s127 = sand.u32 %s25, 1
        %s128 = scalar_lea.sflag [#allocation5], %s127
        %s129 = sand.u32 %s25, 1
        %s130 = smul.addr %s129, 32
        %s131 = scalar_lea.vmem [#allocation4], %s130
        // Predicated region
        $region25: #{topic_forward.2} parent=23 // pred_check
          %p132 = pneg %p38
        $region26: #{topic_forward.2} parent=23 // pred_check_branch
          %134 = sbr.rel (%p132) target = $region28
        $region27: #{topic_forward.2} parent=23 // pred_region
          %135 = dma.done %s128, 512
        $region28: #{topic_forward.2} parent=23 // pred_fallthru
          _
        %s136 = sand.u32 %s25, 1
        %s137 = scalar_lea.sflag [#allocation5], %s136
        %s138 = sand.u32 %s25, 1
        %s139 = smul.addr %s138, 32
        %s140 = scalar_lea.vmem [#allocation4], %s139
        %p141 = pneg %p38
        %p142 = pneg %p35
        %p143 = pneg %p59
        %p144 = pneg %p56
        %p145 = pneg %p80
        %p146 = pneg %p77
        %s147 = smul.u32 2, %s17
        %p148 = scmp.eq.s32.totalorder %s17, 0
        // Predicated region
        $region29: #{topic_forward.2} parent=23 // pred_check
          %p149 = pneg %p148
        $region30: #{topic_forward.2} parent=23 // pred_check_branch
          %151 = sbr.rel (%p149) target = $region32
        $region31: #{topic_forward.2} parent=23 // pred_region
          %vm152 = vcmask 7168
          %153 = vst.msk [vmem:[#allocation2] sm:$0xff] %vm152, -inf
          %154 = vst.msk [vmem:[#allocation2 + $0x8] sm:$0xff] %vm152, -inf
          %155 = vst.msk [vmem:[#allocation3] sm:$0xff] %vm152, 0.0
          %156 = vst.msk [vmem:[#allocation3 + $0x8] sm:$0xff] %vm152, 0.0
        $region32: #{topic_forward.2} parent=23 // pred_fallthru
          _
        %v157 = vld [vmem:[%s131] sm:$0xff]
        %v158 = vld [vmem:[%s131 + $0x8] sm:$0xff]
        %v159 = vld [vmem:[%s131 + $0x10] sm:$0xff]
        %v160 = vld [vmem:[%s131 + $0x18] sm:$0xff]
        %v161 = vld [vmem:[#allocation2] sm:$0xff]
        %v162 = vld [vmem:[#allocation2 + $0x8] sm:$0xff]
        %v163 = vmax.f32 %v157, %v158
        %164 = vmax.xlane.f32.xlu0 %v163
        %v165 = vpop.xlane.xlu0 %164
        %v166 = vmax.f32 %v159, %v160
        %167 = vmax.xlane.f32.xlu0 %v166
        %v168 = vpop.xlane.xlu0 %167
        %v169 = vmax.f32 %v161, %v165
        %v170 = vmax.f32 %v162, %v168
        %v171 = vld [vmem:[#allocation3] sm:$0xff]
        %v172 = vld [vmem:[#allocation3 + $0x8] sm:$0xff]
        %v173 = vsub.f32 %v161, %v169
        %v174 = vsub.f32 %v162, %v170
        %v175 = vmul.f32 %v173, 1.442695
        %v176 = vpow.pop %v175
        %v177 = vmul.f32 %v174, 1.442695
        %v178 = vpow.pop %v177
        %v179 = vmul.f32 %v171, %v176
        %v180 = vmul.f32 %v172, %v178
        %182 = vset.pattern.permute.xlu0 0
        %183 = vperm.xlu0 %182, %v169
        %v184 = vpop.permute.xlu0 %183
        %187 = vset.pattern.permute.xlu0 0
        %188 = vperm.xlu0 %187, %v170
        %v189 = vpop.permute.xlu0 %188
        %v191 = vsub.f32 %v157, %v184
        %v192 = vsub.f32 %v158, %v184
        %v193 = vsub.f32 %v159, %v189
        %v194 = vsub.f32 %v160, %v189
        %v195 = vmul.f32 %v191, 1.442695
        %v196 = vpow.pop %v195
        %v197 = vmul.f32 %v192, 1.442695
        %v198 = vpow.pop %v197
        %v199 = vmul.f32 %v193, 1.442695
        %v200 = vpow.pop %v199
        %v201 = vmul.f32 %v194, 1.442695
        %v202 = vpow.pop %v201
        %v203 = vadd.f32 %v196, %v198
        %204 = vadd.xlane.f32.xlu0 %v203
        %v205 = vpop.xlane.xlu0 %204
        %v206 = vadd.f32 %v200, %v202
        %207 = vadd.xlane.f32.xlu0 %v206
        %v208 = vpop.xlane.xlu0 %207
        %v209 = vadd.f32 %v179, %v205
        %v210 = vadd.f32 %v180, %v208
        %vm211 = vcmask 7168
        %212 = vst.msk [vmem:[#allocation3] sm:$0xff] %vm211, %v209
        %213 = vst.msk [vmem:[#allocation3 + $0x8] sm:$0xff] %vm211, %v210
        %214 = vst.msk [vmem:[#allocation2] sm:$0xff] %vm211, %v169
        %215 = vst.msk [vmem:[#allocation2 + $0x8] sm:$0xff] %vm211, %v170
        %p216 = scmp.eq.s32.totalorder %s17, 3
        // Predicated region
        $region33: #{topic_forward.2} parent=23 // pred_check
          %p217 = pneg %p216
        $region34: #{topic_forward.2} parent=23 // pred_check_branch
          %219 = sbr.rel (%p217) target = $region36
        $region35: #{topic_forward.2} parent=23 // pred_region
          %v220 = vld [vmem:[#allocation2] sm:$0xff]
          %v221 = vld [vmem:[#allocation2 + $0x8] sm:$0xff]
          %222 = vst.msk [vmem:[%s1] sm:$0xff] %vm211, %v220
          %223 = vst.msk [vmem:[%s1 + $0x8] sm:$0xff] %vm211, %v221
          %v224 = vld [vmem:[#allocation3] sm:$0xff]
          %v225 = vld [vmem:[#allocation3 + $0x8] sm:$0xff]
          %v226 = vrcp.pop %v224
          %v227 = vrcp.pop %v225
          %228 = vst.msk [vmem:[%s2] sm:$0xff] %vm211, %v226
          %229 = vst.msk [vmem:[%s2 + $0x8] sm:$0xff] %vm211, %v227
        $region36: #{topic_forward.2} parent=23 // pred_fallthru
          _
        // Predicated region
        $region37: #{topic_forward.2} parent=23 // pred_check
          %p230 = pneg %p56
        $region38: #{topic_forward.2} parent=23 // pred_check_branch
          %232 = sbr.rel (%p230) target = $region40
        $region39: #{topic_forward.2} parent=23 // pred_region
          _
        $region40: #{topic_forward.2} parent=23 // pred_fallthru
          _
        // Predicated region
        $region41: #{topic_forward.2} parent=23 // pred_check
          %p233 = pneg %p77
        $region42: #{topic_forward.2} parent=23 // pred_check_branch
          %235 = sbr.rel (%p233) target = $region44
        $region43: #{topic_forward.2} parent=23 // pred_region
          _
        $region44: #{topic_forward.2} parent=23 // pred_fallthru
          _
        // Predicated region
        $region45: #{topic_forward.2} parent=23 // pred_check
          %p236 = pneg %p56
        $region46: #{topic_forward.2} parent=23 // pred_check_branch
          %238 = sbr.rel (%p236) target = $region48
        $region47: #{topic_forward.2} parent=23 // pred_region
          _
        $region48: #{topic_forward.2} parent=23 // pred_fallthru
          _
        // Predicated region
        $region49: #{topic_forward.2} parent=23 // pred_check
          %p239 = pneg %p77
        $region50: #{topic_forward.2} parent=23 // pred_check_branch
          %241 = sbr.rel (%p239) target = $region52
        $region51: #{topic_forward.2} parent=23 // pred_region
          _
        $region52: #{topic_forward.2} parent=23 // pred_fallthru
          _
      $region24: #{topic_forward.2} parent=5 // pred_fallthru
        _
      %p242 = scmp.le.s32.totalorder 2, %s12
      // Predicated region
      $region53: #{topic_forward.2} parent=5 // pred_check
        %p243 = pneg %p242
      $region54: #{topic_forward.2} parent=5 // pred_check_branch
        %245 = sbr.rel (%p243) target = $region56
      $region55: #{topic_forward.2} parent=5 // pred_region
        %s246 = ssub.s32 %s12, 2
      $region56: #{topic_forward.2} parent=5 // pred_fallthru
        _
    $region6: #{topic_forward.2} parent=1 // loop_footer
      %s16 = sadd.s32 1, %s12
    $region7: #{topic_forward.2} parent=1 // loop_footer_branch
      %11 = sbr.rel target = $region3
    $region8: #{topic_forward.2} parent=1 // loop_exit
      _
    %247 = vsyncpa [#allocation5], 1
    %s248 = scalar_lea.sflag [#allocation5], 1
    %249 = vsyncpa %s248, 1

// kernel: topic_forward.3
$region0: #{topic_forward.3}
  #allocation0 [shape = 'u32[]', space=smem, size = 0x4, offset = 0x4, fixed_abs, tag = 'smem constant byte address 0x4 - core index']
  #allocation1 [shape = 'u32[144,128]{1,0:T(1,128)}', space=vmem, size = 0x12000, scoped, tag = 'internal scratch']
  #allocation2 [shape = 'f32[16,256]{1,0:T(8,128)}', space=vmem, size = 0x4000, scoped, tag = 'scratch operand']
  %s0 = inlined_call_operand.vmem [shape: f32[16,1], index: 0, kind: input, shape index: {}]
  %s1 = inlined_call_operand.vmem [shape: f32[16,1], index: 1, kind: input, shape index: {}]
  %s2 = inlined_call_operand.vmem [shape: f32[64,16], index: 2, kind: input, shape index: {}]
  %s3 = inlined_call_operand.vmem [shape: f32[16,1024], index: 3, kind: input, shape index: {}]
  %s4 = inlined_call_operand.hbm [shape: f32[64,1024], index: 4, kind: output, shape index: {}]
  %s5 = sld [smem:[#allocation0]]
  $region76: #{topic_forward.3} parent=0
    _
  %s7 = ssub.s32 1, %s5
  %s8 = scalar_select 0, %s7, %s5
  $region1: #{topic_forward.3} parent=0
    #allocation3 [shape = 'u8[32768]{0}', space=vmem, size = 0x8000, scoped, tag = 'input window, operand 3']
    #allocation4 [shape = 'u8[65536]{0}', space=vmem, size = 0x10000, scoped, tag = 'output window, operand 0']
    #allocation5 [shape = 's32[2]{0}', space=sflag, size = 0x8, scoped, tag = 'scoped memory for topic_forward.3']
    %9 = vsyncpa [#allocation5], 0
    %s10 = scalar_lea.sflag [#allocation5], 1
    %11 = vsyncpa %s10, 0
    loop: start=0, step=1, limit=10
    $region2: #{topic_forward.3} parent=1 // loop_pre_header
      _
    $region3: #{topic_forward.3} parent=1 // loop_header
      %s13 = sphi 0, %s17
      %p14 = scmp.ge.s32.totalorder %s13, 10
      %s20 = sphi 0, %s32
      %s21 = sphi 0, %s28
      %s22 = sphi 0, %s20
      %s23 = sphi 0, %s21
      %s24 = sphi 0, %s22
      %s25 = sphi 0, %s23
      %s33 = sphi 0, %s33
      %s35 = sphi 0, %s33
      %s36 = sphi 0, %s35
      %s50 = sphi 0, %s36
      %s54 = sphi 0, %s54
      %s56 = sphi 0, %s54
      %s57 = sphi 0, %s56
      %s71 = sphi 0, %s57
      %s77 = sphi 0, %s79
      %s80 = sphi 0, %s77
      %s81 = sphi 0, %s80
      %s97 = sphi 0, %s81
      %s103 = sphi 0, %s105
      %s106 = sphi 0, %s103
      %s107 = sphi 0, %s106
      %s123 = sphi 0, %s107
      %s131 = sphi 0, %s133
      %s134 = sphi 0, %s131
      %s135 = sphi 0, %s134
      %s151 = sphi 0, %s135
    $region4: #{topic_forward.3} parent=1 // loop_header_branch
      %16 = sbr.rel (%p14) target = $region8
    $region5: #{topic_forward.3} parent=1 // loop_body
      %s18 = ssub.s32 %s13, 1
      %s19 = ssub.s32 %s13, 2
      %s26 = sadd.s32 1, %s21
      %p27 = scmp.ge.s32.totalorder %s26, 2
      %s28 = scalar_select %p27, 0, %s26
      %s29 = sadd.s32 1, %s20
      %s30 = scalar_select %p27, %s29, %s20
      %p31 = scmp.ge.s32.totalorder %s30, 4
      %s32 = scalar_select %p31, 0, %s30
      %s34 = sadd.s32 %s33, 1
      %p37 = scmp.eq.s32.totalorder %s13, 7
      %p38 = scmp.ne.s32.totalorder %s33, %s35
      %p39 = scmp.eq.s32.totalorder %s13, 0
      %p40 = por %p38, %p39
      %p41 = scmp.ne.s32.totalorder %s33, %s35
      %p42 = scmp.eq.s32.totalorder %s18, 7
      %p43 = por %p41, %p42
      %p44 = scmp.ne.s32.totalorder %s35, %s36
      %p45 = scmp.eq.s32.totalorder %s18, 0
      %p46 = por %p44, %p45
      %p47 = scmp.ne.s32.totalorder %s35, %s36
      %p48 = scmp.eq.s32.totalorder %s19, 7
      %p49 = por %p47, %p48
      %p51 = scmp.ne.s32.totalorder %s36, %s50
      %p52 = scmp.eq.s32.totalorder %s19, 0
      %p53 = por %p51, %p52
      %s55 = sadd.s32 %s54, 1
      %p58 = scmp.eq.s32.totalorder %s13, 7
      %p59 = scmp.ne.s32.totalorder %s54, %s56
      %p60 = scmp.eq.s32.totalorder %s13, 0
      %p61 = por %p59, %p60
      %p62 = scmp.ne.s32.totalorder %s54, %s56
      %p63 = scmp.eq.s32.totalorder %s18, 7
      %p64 = por %p62, %p63
      %p65 = scmp.ne.s32.totalorder %s56, %s57
      %p66 = scmp.eq.s32.totalorder %s18, 0
      %p67 = por %p65, %p66
      %p68 = scmp.ne.s32.totalorder %s56, %s57
      %p69 = scmp.eq.s32.totalorder %s19, 7
      %p70 = por %p68, %p69
      %p72 = scmp.ne.s32.totalorder %s57, %s71
      %p73 = scmp.eq.s32.totalorder %s19, 0
      %p74 = por %p72, %p73
      %s75 = ssub.s32 %s21, %s28
      %p76 = scmp.eq.s32.totalorder %s75, 0
      %s78 = sadd.s32 %s77, 1
      %s79 = scalar_select %p76, %s77, %s78
      %p82 = pneg %p76
      %p83 = scmp.eq.s32.totalorder %s13, 7
      %p84 = por %p82, %p83
      %p85 = scmp.ne.s32.totalorder %s77, %s80
      %p86 = scmp.eq.s32.totalorder %s13, 0
      %p87 = por %p85, %p86
      %p88 = scmp.ne.s32.totalorder %s77, %s80
      %p89 = scmp.eq.s32.totalorder %s18, 7
      %p90 = por %p88, %p89
      %p91 = scmp.ne.s32.totalorder %s80, %s81
      %p92 = scmp.eq.s32.totalorder %s18, 0
      %p93 = por %p91, %p92
      %p94 = scmp.ne.s32.totalorder %s80, %s81
      %p95 = scmp.eq.s32.totalorder %s19, 7
      %p96 = por %p94, %p95
      %p98 = scmp.ne.s32.totalorder %s81, %s97
      %p99 = scmp.eq.s32.totalorder %s19, 0
      %p100 = por %p98, %p99
      %s101 = ssub.s32 %s20, %s32
      %p102 = scmp.eq.s32.totalorder %s101, 0
      %s104 = sadd.s32 %s103, 1
      %s105 = scalar_select %p102, %s103, %s104
      %p108 = pneg %p102
      %p109 = scmp.eq.s32.totalorder %s13, 7
      %p110 = por %p108, %p109
      %p111 = scmp.ne.s32.totalorder %s103, %s106
      %p112 = scmp.eq.s32.totalorder %s13, 0
      %p113 = por %p111, %p112
      %p114 = scmp.ne.s32.totalorder %s103, %s106
      %p115 = scmp.eq.s32.totalorder %s18, 7
      %p116 = por %p114, %p115
      %p117 = scmp.ne.s32.totalorder %s106, %s107
      %p118 = scmp.eq.s32.totalorder %s18, 0
      %p119 = por %p117, %p118
      %p120 = scmp.ne.s32.totalorder %s106, %s107
      %p121 = scmp.eq.s32.totalorder %s19, 7
      %p122 = por %p120, %p121
      %p124 = scmp.ne.s32.totalorder %s107, %s123
      %p125 = scmp.eq.s32.totalorder %s19, 0
      %p126 = por %p124, %p125
      %s127 = ssub.s32 %s21, %s28
      %s128 = ssub.s32 %s20, %s32
      %s129 = sor.u32 %s127, %s128
      %p130 = scmp.eq.s32.totalorder %s129, 0
      %s132 = sadd.s32 %s131, 1
      %s133 = scalar_select %p130, %s131, %s132
      %p136 = pneg %p130
      %p137 = scmp.eq.s32.totalorder %s13, 7
      %p138 = por %p136, %p137
      %p139 = scmp.ne.s32.totalorder %s131, %s134
      %p140 = scmp.eq.s32.totalorder %s13, 0
      %p141 = por %p139, %p140
      %p142 = scmp.ne.s32.totalorder %s131, %s134
      %p143 = scmp.eq.s32.totalorder %s18, 7
      %p144 = por %p142, %p143
      %p145 = scmp.ne.s32.totalorder %s134, %s135
      %p146 = scmp.eq.s32.totalorder %s18, 0
      %p147 = por %p145, %p146
      %p148 = scmp.ne.s32.totalorder %s134, %s135
      %p149 = scmp.eq.s32.totalorder %s19, 7
      %p150 = por %p148, %p149
      %p152 = scmp.ne.s32.totalorder %s135, %s151
      %p153 = scmp.eq.s32.totalorder %s19, 0
      %p154 = por %p152, %p153
      %p155 = scmp.le.s32.totalorder 1, %s13
      %p156 = scmp.lt.s32.totalorder %s13, 9
      %p157 = pnand %p155, %p156
      %p158 = pneg %p157
      // Predicated region
      $region9: #{topic_forward.3} parent=5 // pred_check
        _
      $region10: #{topic_forward.3} parent=5 // pred_check_branch
        %160 = sbr.rel (%p157) target = $region12
      $region11: #{topic_forward.3} parent=5 // pred_region
        %s161 = ssub.s32 %s13, 1
        // Predicated region
        $region13: #{topic_forward.3} parent=11 // pred_check
          %p162 = pneg %p46
        $region14: #{topic_forward.3} parent=11 // pred_check_branch
          %164 = sbr.rel (%p162) target = $region16
        $region15: #{topic_forward.3} parent=11 // pred_region
          _
        $region16: #{topic_forward.3} parent=11 // pred_fallthru
          _
        // Predicated region
        $region17: #{topic_forward.3} parent=11 // pred_check
          %p165 = pneg %p67
        $region18: #{topic_forward.3} parent=11 // pred_check_branch
          %167 = sbr.rel (%p165) target = $region20
        $region19: #{topic_forward.3} parent=11 // pred_region
          _
        $region20: #{topic_forward.3} parent=11 // pred_fallthru
          _
      $region12: #{topic_forward.3} parent=5 // pred_fallthru
        _
      %p168 = scmp.lt.s32.totalorder %s13, 8
      // Predicated region
      $region21: #{topic_forward.3} parent=5 // pred_check
        %p169 = pneg %p168
      $region22: #{topic_forward.3} parent=5 // pred_check_branch
        %171 = sbr.rel (%p169) target = $region24
      $region23: #{topic_forward.3} parent=5 // pred_region
        // Predicated region
        $region25: #{topic_forward.3} parent=23 // pred_check
          %p172 = pneg %p87
        $region26: #{topic_forward.3} parent=23 // pred_check_branch
          %174 = sbr.rel (%p172) target = $region28
        $region27: #{topic_forward.3} parent=23 // pred_region
          %s175 = smul.u32 4, %s21
          %p176 = scmp.lt.s32.totalorder %s175, 7
          %s177 = scalar_select %p176, %s175, 7
          %s178 = smul.addr %s177, 8
          %s179 = scalar_lea.vmem %s2, %s178
          %s180 = smul.u32 4, %s21
        $region28: #{topic_forward.3} parent=23 // pred_fallthru
          _
        // Predicated region
        $region29: #{topic_forward.3} parent=23 // pred_check
          %p181 = pneg %p113
        $region30: #{topic_forward.3} parent=23 // pred_check_branch
          %183 = sbr.rel (%p181) target = $region32
        $region31: #{topic_forward.3} parent=23 // pred_region
          %s184 = sand.u32 %s103, 1
          %s185 = sand.u32 %s103, 1
          %s186 = smul.addr %s185, 32
          %s187 = scalar_lea.vmem [#allocation3], %s186
          %s188 = smul.u32 2, %s20
          %s189 = smul.addr %s188, 8
          %s190 = scalar_lea.vmem %s3, %s189
          // Predicated region
          $region33: #{topic_forward.3} parent=31 // pred_check
            _
          $region34: #{topic_forward.3} parent=31 // pred_check_branch
            %192 = sbr.rel (0) target = $region36
          $region35: #{topic_forward.3} parent=31 // pred_region
            // Predicated region
            $region37: #{topic_forward.3} parent=35 // pred_check
              _
            $region38: #{topic_forward.3} parent=35 // pred_check_branch
              %194 = sbr.rel (0) target = $region40
            $region39: #{topic_forward.3} parent=35 // pred_region
              loop: start=0, step=1, limit=1
              $region41: #{topic_forward.3} parent=39 // loop_pre_header
                _
              $region42: #{topic_forward.3} parent=39 // loop_header
                %s196 = sphi 0, %s200
                %p197 = scmp.ge.s32.totalorder %s196, 1
                %s201 = sphi %s190, %s190
                %s202 = sphi %s187, %s187
              $region43: #{topic_forward.3} parent=39 // loop_header_branch
                %199 = sbr.rel (%p197) target = $region47
              $region44: #{topic_forward.3} parent=39 // loop_body
                %v203 = vld [vmem:[%s201] sm:$0xff]
                %204 = vst [vmem:[%s202] sm:$0xff] %v203
                %v205 = vld [vmem:[%s201 + $0x8] sm:$0xff]
                %206 = vst [vmem:[%s202 + $0x8] sm:$0xff] %v205
                %v207 = vld [vmem:[%s201 + $0x40] sm:$0xff]
                %208 = vst [vmem:[%s202 + $0x10] sm:$0xff] %v207
                %v209 = vld [vmem:[%s201 + $0x48] sm:$0xff]
                %210 = vst [vmem:[%s202 + $0x18] sm:$0xff] %v209
              $region45: #{topic_forward.3} parent=39 // loop_footer
                %s200 = sadd.s32 1, %s196
              $region46: #{topic_forward.3} parent=39 // loop_footer_branch
                %195 = sbr.rel target = $region42
              $region47: #{topic_forward.3} parent=39 // loop_exit
                _
            $region40: #{topic_forward.3} parent=35 // pred_fallthru
              _
            // Predicated region
            $region48: #{topic_forward.3} parent=35 // pred_check
              _
            $region49: #{topic_forward.3} parent=35 // pred_check_branch
              %212 = sbr.rel target = $region51
            $region50: #{topic_forward.3} parent=35 // pred_region
              _
            $region51: #{topic_forward.3} parent=35 // pred_fallthru
              _
          $region36: #{topic_forward.3} parent=31 // pred_fallthru
            _
          %213 = vnop
        $region32: #{topic_forward.3} parent=23 // pred_fallthru
          _
      $region24: #{topic_forward.3} parent=5 // pred_fallthru
        _
      %p214 = scmp.le.s32.totalorder 1, %s13
      %p215 = scmp.lt.s32.totalorder %s13, 9
      %p216 = pnand %p214, %p215
      %p217 = pneg %p216
      // Predicated region
      $region52: #{topic_forward.3} parent=5 // pred_check
        _
      $region53: #{topic_forward.3} parent=5 // pred_check_branch
        %219 = sbr.rel (%p216) target = $region55
      $region54: #{topic_forward.3} parent=5 // pred_region
        %s220 = ssub.s32 %s13, 1
        %s221 = sand.u32 %s106, 1
        %s222 = sand.u32 %s106, 1
        %s223 = smul.addr %s222, 32
        %s224 = scalar_lea.vmem [#allocation3], %s223
        // Predicated region
        $region56: #{topic_forward.3} parent=54 // pred_check
          %p225 = pneg %p119
        $region57: #{topic_forward.3} parent=54 // pred_check_branch
          %227 = sbr.rel (%p225) target = $region59
        $region58: #{topic_forward.3} parent=54 // pred_region
          _
        $region59: #{topic_forward.3} parent=54 // pred_fallthru
          _
        %p228 = pneg %p46
        %p229 = pneg %p43
        %p230 = pneg %p67
        %p231 = pneg %p64
        %s232 = smul.u32 4, %s23
        %p233 = scmp.lt.s32.totalorder %s232, 7
        %s234 = scalar_select %p233, %s232, 7
        %s235 = smul.addr %s234, 8
        %s236 = scalar_lea.vmem %s2, %s235
        %p237 = pneg %p93
        %p238 = pneg %p90
        %s239 = sand.u32 %s106, 1
        %s240 = sand.u32 %s106, 1
        %s241 = smul.addr %s240, 32
        %s242 = scalar_lea.vmem [#allocation3], %s241
        %p243 = pneg %p119
        %p244 = pneg %p116
        %p245 = pneg %p147
        %p246 = pneg %p144
        %s247 = sand.u32 %s134, 1
        %s248 = scalar_lea.sflag [#allocation5], %s247
        %s249 = sand.u32 %s134, 1
        %s250 = smul.addr %s249, 64
        %s251 = scalar_lea.vmem [#allocation4], %s250
        %s252 = smul.u32 4, %s23
        %p253 = scmp.lt.s32.totalorder %s252, 7
        %s254 = scalar_select %p253, %s252, 7
        %s255 = smul.addr %s254, 8
        %s256 = scalar_lea.vmem %s2, %s255
        %s257 = smul.u32 4, %s23
        %s258 = smul.u32 2, %s22
        %s259 = smul.u32 4, %s23
        %s260 = smul.u32 2, %s22
        %p261 = scmp.eq.s32.totalorder %s23, 0
        // Predicated region
        $region60: #{topic_forward.3} parent=54 // pred_check
          %p262 = pneg %p261
        $region61: #{topic_forward.3} parent=54 // pred_check_branch
          %264 = sbr.rel (%p262) target = $region63
        $region62: #{topic_forward.3} parent=54 // pred_region
          %v265 = vld [vmem:[%s224] sm:$0xff]
          %v266 = vld [vmem:[%s224 + $0x8] sm:$0xff]
          %v267 = vld [vmem:[%s224 + $0x10] sm:$0xff]
          %v268 = vld [vmem:[%s224 + $0x18] sm:$0xff]
          %v269 = vld [vmem:[%s0] sm:$0xff]
          %v270 = vld [vmem:[%s0 + $0x8] sm:$0xff]
          %272 = vset.pattern.permute.xlu0 0
          %273 = vperm.xlu0 %272, %v269
          %v274 = vpop.permute.xlu0 %273
          %277 = vset.pattern.permute.xlu0 0
          %278 = vperm.xlu0 %277, %v270
          %v279 = vpop.permute.xlu0 %278
          %v281 = vsub.f32 %v265, %v274
          %v282 = vsub.f32 %v266, %v274
          %v283 = vsub.f32 %v267, %v279
          %v284 = vsub.f32 %v268, %v279
          %v285 = vmul.f32 %v281, 1.442695
          %v286 = vpow.pop %v285
          %v287 = vmul.f32 %v282, 1.442695
          %v288 = vpow.pop %v287
          %v289 = vmul.f32 %v283, 1.442695
          %v290 = vpow.pop %v289
          %v291 = vmul.f32 %v284, 1.442695
          %v292 = vpow.pop %v291
          %v293 = vld [vmem:[%s1] sm:$0xff]
          %v294 = vld [vmem:[%s1 + $0x8] sm:$0xff]
          %296 = vset.pattern.permute.xlu0 0
          %297 = vperm.xlu0 %296, %v293
          %v298 = vpop.permute.xlu0 %297
          %301 = vset.pattern.permute.xlu0 0
          %302 = vperm.xlu0 %301, %v294
          %v303 = vpop.permute.xlu0 %302
          %v305 = vmul.f32 %v286, %v298
          %v306 = vmul.f32 %v288, %v298
          %v307 = vmul.f32 %v290, %v303
          %v308 = vmul.f32 %v292, %v303
          %309 = vst [vmem:[#allocation2] sm:$0xff] %v305
          %310 = vst [vmem:[#allocation2 + $0x8] sm:$0xff] %v306
          %311 = vst [vmem:[#allocation2 + $0x10] sm:$0xff] %v307
          %312 = vst [vmem:[#allocation2 + $0x18] sm:$0xff] %v308
        $region63: #{topic_forward.3} parent=54 // pred_fallthru
          _
        %v313 = vld [vmem:[%s256] sm:$0xff]
        %v314 = vld [vmem:[%s256 + $0x8] sm:$0xff]
        %v315 = vld [vmem:[%s256 + $0x10] sm:$0xff]
        %v316 = vld [vmem:[%s256 + $0x18] sm:$0xff]
        %v317 = vld [vmem:[#allocation2] sm:$0xff]
        %v318 = vld [vmem:[#allocation2 + $0x8] sm:$0xff]
        %v319 = vld [vmem:[#allocation2 + $0x10] sm:$0xff]
        %v320 = vld [vmem:[#allocation2 + $0x18] sm:$0xff]
        %vm321 = vcmask 130048
        %v323 = vsel %vm321, %v313, 0
        %v326 = vsel %vm321, %v314, 0
        %v329 = vsel %vm321, %v315, 0
        %v332 = vsel %vm321, %v316, 0
        %334 = vmatprep.subr.mxu0 0.0
        %335 = vmatpush1.msra.mxu0 0.0
        %336 = vmatprep.subr.mxu0 0.0
        %337 = vmatpush1.msra.mxu0 0.0
        %338 = vmatprep.subr.mxu0 0.0
        %339 = vmatpush1.msra.mxu0 0.0
        %340 = vmatprep.subr.mxu0 0.0
        %341 = vmatpush1.msra.mxu0 0.0
        %342 = vmatprep.subr.mxu0 0.0
        %343 = vmatpush1.msra.mxu0 0.0
        %344 = vmatprep.subr.mxu0 0.0
        %345 = vmatpush1.msra.mxu0 0.0
        %346 = vmatprep.subr.mxu0 0.0
        %347 = vmatpush1.msra.mxu0 0.0
        %348 = vmatprep.subr.mxu0 0.0
        %349 = vmatpush1.msra.mxu0 0.0
        %350 = vmatprep.subr.mxu0 0.0
        %351 = vmatpush1.msra.mxu0 0.0
        %352 = vmatprep.subr.mxu0 0.0
        %353 = vmatpush1.msra.mxu0 0.0
        %354 = vmatprep.subr.mxu0 0.0
        %355 = vmatpush1.msra.mxu0 0.0
        %356 = vmatprep.subr.mxu0 0.0
        %357 = vmatpush1.msra.mxu0 0.0
        %358 = vmatprep.subr.mxu0 0.0
        %359 = vmatpush1.msra.mxu0 0.0
        %360 = vmatprep.subr.mxu0 0.0
        %361 = vmatpush1.msra.mxu0 0.0
        %362 = vmatprep.subr.mxu0 %v320
        %363 = vmatpush1.msra.mxu0 %v319
        %364 = vmatprep.subr.mxu0 %v318
        %365 = vmatpush1.msra.mxu0 %v317
        %366 = vmatprep.subr.mxu0 0.0
        %367 = vmatpush2.msra.mxu0 0.0
        %368 = vmatprep.subr.mxu0 0.0
        %369 = vmatpush2.msra.mxu0 0.0
        %370 = vmatprep.subr.mxu0 0.0
        %371 = vmatpush2.msra.mxu0 0.0
        %372 = vmatprep.subr.mxu0 0.0
        %373 = vmatpush2.msra.mxu0 0.0
        %374 = vmatprep.subr.mxu0 0.0
        %375 = vmatpush2.msra.mxu0 0.0
        %376 = vmatprep.subr.mxu0 0.0
        %377 = vmatpush2.msra.mxu0 0.0
        %378 = vmatprep.subr.mxu0 0.0
        %379 = vmatpush2.msra.mxu0 0.0
        %380 = vmatprep.subr.mxu0 0.0
        %381 = vmatpush2.msra.mxu0 0.0
        %382 = vmatprep.subr.mxu0 0.0
        %383 = vmatpush2.msra.mxu0 0.0
        %384 = vmatprep.subr.mxu0 0.0
        %385 = vmatpush2.msra.mxu0 0.0
        %386 = vmatprep.subr.mxu0 0.0
        %387 = vmatpush2.msra.mxu0 0.0
        %388 = vmatprep.subr.mxu0 0.0
        %389 = vmatpush2.msra.mxu0 0.0
        %390 = vmatprep.subr.mxu0 0.0
        %391 = vmatpush2.msra.mxu0 0.0
        %392 = vmatprep.subr.mxu0 0.0
        %393 = vmatpush2.msra.mxu0 0.0
        %394 = vmatprep.subr.mxu0 0.0
        %395 = vmatpush2.msra.mxu0 0.0
        %396 = vmatprep.subr.mxu0 0.0
        %397 = vmatpush2.msra.mxu0 0.0
        %398 = vmatprep.mubr.f32.mxu0 0.0
        %399 = vmatmul.mubr.f32.gmra.mxu0 %v323
        %v400 = vpop.f32.mrf.mxu0
        %v401 = vadd.f32 0.0, %v400
        %v402 = vpop.f32.mrf.mxu0
        %v403 = vadd.f32 0.0, %v402
        %404 = vmatprep.mubr.f32.mxu0 0.0
        %405 = vmatmul.mubr.f32.gmra.mxu0 %v326
        %v406 = vpop.f32.mrf.mxu0
        %v407 = vadd.f32 0.0, %v406
        %v408 = vpop.f32.mrf.mxu0
        %v409 = vadd.f32 0.0, %v408
        %410 = vmatprep.mubr.f32.mxu0 0.0
        %411 = vmatmul.mubr.f32.gmra.mxu0 %v329
        %v412 = vpop.f32.mrf.mxu0
        %v413 = vadd.f32 0.0, %v412
        %v414 = vpop.f32.mrf.mxu0
        %v415 = vadd.f32 0.0, %v414
        %416 = vmatprep.mubr.f32.mxu0 0.0
        %417 = vmatmul.mubr.f32.gmra.mxu0 %v332
        %v418 = vpop.f32.mrf.mxu0
        %v419 = vadd.f32 0.0, %v418
        %v420 = vpop.f32.mrf.mxu0
        %v421 = vadd.f32 0.0, %v420
        %422 = vdwg.mxu0
        %423 = vst [vmem:[%s251] sm:$0xff] %v401
        %424 = vst [vmem:[%s251 + $0x8] sm:$0xff] %v403
        %425 = vst [vmem:[%s251 + $0x10] sm:$0xff] %v407
        %426 = vst [vmem:[%s251 + $0x18] sm:$0xff] %v409
        %427 = vst [vmem:[%s251 + $0x20] sm:$0xff] %v413
        %428 = vst [vmem:[%s251 + $0x28] sm:$0xff] %v415
        %429 = vst [vmem:[%s251 + $0x30] sm:$0xff] %v419
        %430 = vst [vmem:[%s251 + $0x38] sm:$0xff] %v421
        %s431 = sand.u32 %s134, 1
        %s432 = scalar_lea.sflag [#allocation5], %s431
        %s433 = sand.u32 %s134, 1
        %s434 = smul.addr %s433, 64
        %s435 = scalar_lea.vmem [#allocation4], %s434
        // Predicated region
        $region64: #{topic_forward.3} parent=54 // pred_check
          %p436 = pneg %p144
        $region65: #{topic_forward.3} parent=54 // pred_check_branch
          %438 = sbr.rel (%p436) target = $region67
        $region66: #{topic_forward.3} parent=54 // pred_region
          %s439 = smul.u32 4, %s23
          %s440 = smul.u32 2, %s22
          %s442 = ssub.s32 1024, 1024
          %443 = vsyncadd %s432, %s442
          %s444 = smul.addr %s439, 8
          %s445 = sadd.s32 %s440, %s444
          %s446 = smul.addr %s445, 128
          %s447 = scalar_lea.hbm %s4, %s446
          %s448 = sshll.u32 %s435, 4
          %s449 = int_to_ptr.vmem [resolvable:$true] %s448
          %454 = dma.vmem_to_hbm [thread:$0]  %s449, 1024, %s447, %s432, 256, 1024, 16
        $region67: #{topic_forward.3} parent=54 // pred_fallthru
          _
      $region55: #{topic_forward.3} parent=5 // pred_fallthru
        _
      %p455 = scmp.le.s32.totalorder 2, %s13
      // Predicated region
      $region68: #{topic_forward.3} parent=5 // pred_check
        %p456 = pneg %p455
      $region69: #{topic_forward.3} parent=5 // pred_check_branch
        %458 = sbr.rel (%p456) target = $region71
      $region70: #{topic_forward.3} parent=5 // pred_region
        %s459 = ssub.s32 %s13, 2
        // Predicated region
        $region72: #{topic_forward.3} parent=70 // pred_check
          %p460 = pneg %p150
        $region73: #{topic_forward.3} parent=70 // pred_check_branch
          %462 = sbr.rel (%p460) target = $region75
        $region74: #{topic_forward.3} parent=70 // pred_region
          %s463 = sand.u32 %s135, 1
          %s464 = scalar_lea.sflag [#allocation5], %s463
          %s465 = sand.u32 %s135, 1
          %s466 = smul.addr %s465, 64
          %s467 = scalar_lea.vmem [#allocation4], %s466
          %468 = dma.done %s464, 1024
        $region75: #{topic_forward.3} parent=70 // pred_fallthru
          _
      $region71: #{topic_forward.3} parent=5 // pred_fallthru
        _
    $region6: #{topic_forward.3} parent=1 // loop_footer
      %s17 = sadd.s32 1, %s13
    $region7: #{topic_forward.3} parent=1 // loop_footer_branch
      %12 = sbr.rel target = $region3
    $region8: #{topic_forward.3} parent=1 // loop_exit
      _
    %469 = vsyncpa [#allocation5], 1
    %s470 = scalar_lea.sflag [#allocation5], 1
    %471 = vsyncpa %s470, 1

</llo_original>
